<compile_context>
chip_gen: v5e
topology: v5e:2x2
jax: 0.10.0
libtpu: 0.0.40
codegen_flags: <defaults>
</compile_context>

<pallas_src>
import functools

import jax
import jax.numpy as jnp
from jax.experimental import pallas as pl
from jax.experimental.pallas import tpu as pltpu

HIDDEN = 8  # both hidden layers are width 8


def mlp_kernel(xT_ref, pack_ref, o_ref, *, num_features):
    F = num_features
    xT = xT_ref[...]          # (F, Bt)       batch on lanes
    pack = pack_ref[...]      # (8, F + 12)   resident packed params

    w1 = pack[:, 0:F]               # (8, F)   torch layout (out, in)
    b1 = pack[:, F:F + 1]           # (8, 1)
    w2 = pack[:, F + 1:F + 9]       # (8, 8)
    b2 = pack[:, F + 9:F + 10]      # (8, 1)
    w3t = pack[:, F + 10:F + 11]    # (8, 1)   == W3.T
    b3 = pack[0:1, F + 11:F + 12]   # (1, 1)

    # layer 1: (8,F) @ (F,Bt) -> (8,Bt); f32 accumulation, bias bcast over lanes
    h1 = jnp.dot(w1, xT, preferred_element_type=jnp.float32) + b1
    h1 = jnp.maximum(h1, 0.0)
    # layer 2: (8,8) @ (8,Bt) -> (8,Bt)
    h2 = jnp.dot(w2, h1, preferred_element_type=jnp.float32) + b2
    h2 = jnp.maximum(h2, 0.0)
    # layer 3: keep the tiny (1x8) contraction off the MXU: VPU mul + sublane reduce
    z = jnp.sum(w3t * h2, axis=0, keepdims=True) + b3       # (1, Bt)
    o_ref[...] = jax.nn.sigmoid(z)


def pack_params(params):
    """Pack torch-layout (W1,b1,W2,b2,W3,b3) into one (8, F+12) f32 buffer."""
    w1, b1, w2, b2, w3, b3 = params
    return jnp.concatenate(
        [
            w1.astype(jnp.float32),                               # (8, F)
            b1.reshape(HIDDEN, 1).astype(jnp.float32),            # (8, 1)
            w2.astype(jnp.float32),                               # (8, 8)
            b2.reshape(HIDDEN, 1).astype(jnp.float32),            # (8, 1)
            w3.reshape(HIDDEN, 1).astype(jnp.float32),            # (8, 1) == W3.T
            jnp.full((HIDDEN, 1), b3.reshape(()), jnp.float32),   # (8, 1) b3 bcast
        ],
        axis=1,
    )


def mlp_forward(x, params, *, b_tile=512):
    """Matches torch: sigmoid(relu(relu(x@W1.T+b1)@W2.T+b2)@W3.T+b3) -> (B, 1)."""
    B, F = x.shape
    pack = pack_params(params)                                   # (8, F + 12)

    # batch on the lane axis, padded to a multiple of the lane tile
    n_blocks = pl.cdiv(B, b_tile)
    B_pad = n_blocks * b_tile
    xT = jnp.zeros((F, B_pad), jnp.float32).at[:, :B].set(x.T.astype(jnp.float32))

    yT = pl.pallas_call(
        functools.partial(mlp_kernel, num_features=F),
        out_shape=jax.ShapeDtypeStruct((1, B_pad), jnp.float32),
        grid=(n_blocks,),
        in_specs=[
            pl.BlockSpec((F, b_tile), lambda i: (0, i)),         # stream batch tiles
            pl.BlockSpec(pack.shape, lambda i: (0, 0)),          # params stay resident
        ],
        out_specs=pl.BlockSpec((1, b_tile), lambda i: (0, i)),   # lane-dense stores
        compiler_params=pltpu.CompilerParams(
            dimension_semantics=("parallel",),                   # megacore / 2 TCs on v7x
        ),
    )(xT, pack)

    return yT[:, :B].T                                           # (B, 1)


def init_params(key, num_features):
    """Torch-layout params: W_i is (out_features, in_features)."""
    k1, k2, k3, k4, k5, k6 = jax.random.split(key, 6)
    w1 = jax.random.normal(k1, (HIDDEN, num_features), jnp.float32) * 0.5
    b1 = jax.random.normal(k2, (HIDDEN,), jnp.float32) * 0.1
    w2 = jax.random.normal(k3, (HIDDEN, HIDDEN), jnp.float32) * 0.5
    b2 = jax.random.normal(k4, (HIDDEN,), jnp.float32) * 0.1
    w3 = jax.random.normal(k5, (1, HIDDEN), jnp.float32) * 0.5
    b3 = jax.random.normal(k6, (1,), jnp.float32) * 0.1
    return (w1, b1, w2, b2, w3, b3)


def mlp_reference(x, params):
    w1, b1, w2, b2, w3, b3 = params
    h1 = jnp.maximum(x @ w1.T + b1, 0.0)
    h2 = jnp.maximum(h1 @ w2.T + b2, 0.0)
    return jax.nn.sigmoid(h2 @ w3.T + b3)


if __name__ == "__main__":
    key = jax.random.PRNGKey(0)
    k_x, k_p = jax.random.split(key)

    # bankNotes dataset scale: 1372 rows x 4 features, whole-dataset inference
    # in a single pallas_call (padded to a multiple of the 512-lane batch tile).
    batch, num_features = 1372, 4
    x = jax.random.normal(k_x, (batch, num_features), jnp.float32)
    params = init_params(k_p, num_features)

    out = jax.block_until_ready(mlp_forward(x, params))

    ref = mlp_reference(x, params)
    assert out.shape == (batch, 1)
    assert jnp.allclose(out, ref, atol=1e-5, rtol=1e-5), float(jnp.max(jnp.abs(out - ref)))

    print("KERNEL_OK")
</pallas_src>

<mosaic_0001>
module attributes {stable_mosaic.version = 11 : i64} {
  func.func @mlp_kernel(%arg0: i32, %arg1: memref<4x512xf32, #tpu.memory_space<vmem>>, %arg2: memref<8x16xf32, #tpu.memory_space<vmem>>, %arg3: memref<1x512xf32, #tpu.memory_space<vmem>>) attributes {dimension_semantics = [#tpu.dimension_semantics<parallel>], iteration_bounds = array<i64: 3>, scalar_prefetch = 0 : i64, scratch_operands = 0 : i64, tpu.core_type = #tpu.core_type<tc>, window_params = [{transform_indices = @transform_0, window_bounds = array<i64: 4, 512>}, {pipeline_mode = #tpu.pipeline_mode<synchronous>, transform_indices = @transform_1, window_bounds = array<i64: 8, 16>}, {transform_indices = @transform_2, window_bounds = array<i64: 1, 512>}]} {
    %c0 = arith.constant 0 : index
    %c0_0 = arith.constant 0 : index
    %0 = vector.load %arg1[%c0, %c0_0] : memref<4x512xf32, #tpu.memory_space<vmem>>, vector<4x512xf32>
    %c0_1 = arith.constant 0 : index
    %c0_2 = arith.constant 0 : index
    %1 = vector.load %arg2[%c0_1, %c0_2] : memref<8x16xf32, #tpu.memory_space<vmem>>, vector<8x16xf32>
    %2 = vector.extract_strided_slice %1 {offsets = [0, 0], sizes = [8, 4], strides = [1, 1]} : vector<8x16xf32> to vector<8x4xf32>
    %3 = vector.extract_strided_slice %1 {offsets = [0, 4], sizes = [8, 1], strides = [1, 1]} : vector<8x16xf32> to vector<8x1xf32>
    %4 = vector.extract_strided_slice %1 {offsets = [0, 5], sizes = [8, 8], strides = [1, 1]} : vector<8x16xf32> to vector<8x8xf32>
    %5 = vector.extract_strided_slice %1 {offsets = [0, 13], sizes = [8, 1], strides = [1, 1]} : vector<8x16xf32> to vector<8x1xf32>
    %6 = vector.extract_strided_slice %1 {offsets = [0, 14], sizes = [8, 1], strides = [1, 1]} : vector<8x16xf32> to vector<8x1xf32>
    %7 = vector.extract_strided_slice %1 {offsets = [0, 15], sizes = [1, 1], strides = [1, 1]} : vector<8x16xf32> to vector<1x1xf32>
    %cst = arith.constant dense<0.000000e+00> : vector<8x512xf32>
    %8 = tpu.matmul %2, %0, %cst {dimension_numbers = #tpu.dot_dimension_numbers<[1], [0], [0], [1], [0, 0, 1, 1], [], []>} : vector<8x4xf32>, vector<4x512xf32>, vector<8x512xf32> -> vector<8x512xf32>
    %9 = vector.broadcast %3 : vector<8x1xf32> to vector<8x512xf32>
    %10 = arith.addf %8, %9 : vector<8x512xf32>
    %cst_3 = arith.constant 0.000000e+00 : f32
    %11 = vector.broadcast %cst_3 : f32 to vector<8x512xf32>
    %12 = arith.maximumf %10, %11 : vector<8x512xf32>
    %cst_4 = arith.constant dense<0.000000e+00> : vector<8x512xf32>
    %13 = tpu.matmul %4, %12, %cst_4 {dimension_numbers = #tpu.dot_dimension_numbers<[1], [0], [0], [1], [0, 0, 1, 1], [], []>} : vector<8x8xf32>, vector<8x512xf32>, vector<8x512xf32> -> vector<8x512xf32>
    %14 = vector.broadcast %5 : vector<8x1xf32> to vector<8x512xf32>
    %15 = arith.addf %13, %14 : vector<8x512xf32>
    %cst_5 = arith.constant 0.000000e+00 : f32
    %16 = vector.broadcast %cst_5 : f32 to vector<8x512xf32>
    %17 = arith.maximumf %15, %16 : vector<8x512xf32>
    %18 = vector.broadcast %6 : vector<8x1xf32> to vector<8x512xf32>
    %19 = arith.mulf %18, %17 : vector<8x512xf32>
    %cst_6 = arith.constant dense<0.000000e+00> : vector<512xf32>
    %20 = vector.multi_reduction <add>, %19, %cst_6 [0] : vector<8x512xf32> to vector<512xf32>
    %21 = vector.shape_cast %20 : vector<512xf32> to vector<1x512xf32>
    %22 = vector.broadcast %7 : vector<1x1xf32> to vector<1x512xf32>
    %23 = arith.addf %21, %22 : vector<1x512xf32>
    %24 = arith.negf %23 : vector<1x512xf32>
    %25 = math.exp %24 : vector<1x512xf32>
    %cst_7 = arith.constant 1.000000e+00 : f32
    %26 = vector.broadcast %cst_7 : f32 to vector<1x512xf32>
    %27 = arith.addf %26, %25 : vector<1x512xf32>
    %28 = arith.divf %26, %27 : vector<1x512xf32>
    %c0_8 = arith.constant 0 : index
    %c0_9 = arith.constant 0 : index
    %29 = vector.load %arg3[%c0_8, %c0_9] : memref<1x512xf32, #tpu.memory_space<vmem>>, vector<1x512xf32>
    tpu.vector_store %arg3[%c0_8, %c0_9], %28 {strides = array<i32>} : memref<1x512xf32, #tpu.memory_space<vmem>>, vector<1x512xf32>,
    return
  }
  func.func @transform_0(%arg0: i32) -> (i32, i32) {
    %c0_i32 = arith.constant 0 : i32
    %c0_i32_0 = arith.constant 0 : i32
    return %c0_i32, %arg0 : i32, i32
  }
  func.func @transform_1(%arg0: i32) -> (i32, i32) {
    %c0_i32 = arith.constant 0 : i32
    %c0_i32_0 = arith.constant 0 : i32
    %c0_i32_1 = arith.constant 0 : i32
    return %c0_i32, %c0_i32_0 : i32, i32
  }
  func.func @transform_2(%arg0: i32) -> (i32, i32) {
    %c0_i32 = arith.constant 0 : i32
    %c0_i32_0 = arith.constant 0 : i32
    return %c0_i32, %arg0 : i32, i32
  }
}

</mosaic_0001>

<llo_original>
// kernel: tpu_custom_call.1
$region0: #{tpu_custom_call.1}
  #allocation0 [shape = 'u32[]', space=smem, size = 0x4, offset = 0x4, fixed_abs, tag = 'smem constant byte address 0x4 - core index']
  #allocation1 [shape = 'u32[72,128]{1,0:T(1,128)}', space=vmem, size = 0x9000, scoped, tag = 'internal scratch']
  %s0 = inlined_call_operand.hbm [shape: f32[4,1536], index: 0, kind: input, shape index: {}]
  %s1 = inlined_call_operand.hbm [shape: f32[8,16], index: 1, kind: input, shape index: {}]
  %s2 = inlined_call_operand.hbm [shape: f32[1,1536], index: 2, kind: output, shape index: {}]
  %s3 = sld [smem:[#allocation0]]
  $region49: #{tpu_custom_call.1} parent=0
    _
  %s5 = ssub.s32 1, %s3
  %s6 = scalar_select 0, %s5, %s3
  $region1: #{tpu_custom_call.1} parent=0
    #allocation2 [shape = 'u8[16384]{0}', space=vmem, size = 0x4000, scoped, tag = 'input window, operand 0']
    #allocation3 [shape = 's32[2]{0}', space=sflag, size = 0x8, scoped, tag = 'scoped memory for tpu_custom_call.1']
    #allocation4 [shape = 's32[2]{0}', space=sflag, size = 0x8, scoped, tag = 'scoped memory for tpu_custom_call.1']
    #allocation5 [shape = 'u8[4096]{0}', space=vmem, size = 0x1000, scoped, tag = 'input window, operand 1, single buffered']
    #allocation6 [shape = 's32[1]{0}', space=sflag, size = 0x4, scoped, tag = 'scoped memory for tpu_custom_call.1']
    #allocation7 [shape = 'u8[4096]{0}', space=vmem, size = 0x1000, scoped, tag = 'output window, operand 0']
    %7 = vsyncpa [#allocation3], 0
    %s8 = scalar_lea.sflag [#allocation3], 1
    %9 = vsyncpa %s8, 0
    %10 = vsyncpa [#allocation6], 0
    %11 = vsyncpa [#allocation4], 0
    %s12 = scalar_lea.sflag [#allocation4], 1
    %13 = vsyncpa %s12, 0
    loop: start=0, step=1, limit=5
    $region2: #{tpu_custom_call.1} parent=1 // loop_pre_header
      _
    $region3: #{tpu_custom_call.1} parent=1 // loop_header
      %s15 = sphi 0, %s19
      %p16 = scmp.ge.s32.totalorder %s15, 5
      %s25 = sphi 0, %s27
      %s28 = sphi 0, %s25
      %s29 = sphi 0, %s28
      %s45 = sphi 0, %s29
      %s49 = sphi 0, %s49
      %s51 = sphi 0, %s49
      %s52 = sphi 0, %s51
      %s66 = sphi 0, %s52
      %s72 = sphi 0, %s74
      %s75 = sphi 0, %s72
      %s76 = sphi 0, %s75
      %s92 = sphi 0, %s76
    $region4: #{tpu_custom_call.1} parent=1 // loop_header_branch
      %18 = sbr.rel (%p16) target = $region8
    $region5: #{tpu_custom_call.1} parent=1 // loop_body
      %s20 = ssub.s32 %s15, 1
      %s21 = ssub.s32 %s15, 2
      %s22 = sadd.s32 %s15, 1
      %s23 = ssub.s32 %s15, %s22
      %p24 = scmp.eq.s32.totalorder %s23, 0
      %s26 = sadd.s32 %s25, 1
      %s27 = scalar_select %p24, %s25, %s26
      %p30 = pneg %p24
      %p31 = scmp.eq.s32.totalorder %s15, 2
      %p32 = por %p30, %p31
      %p33 = scmp.ne.s32.totalorder %s25, %s28
      %p34 = scmp.eq.s32.totalorder %s15, 0
      %p35 = por %p33, %p34
      %p36 = scmp.ne.s32.totalorder %s25, %s28
      %p37 = scmp.eq.s32.totalorder %s20, 2
      %p38 = por %p36, %p37
      %p39 = scmp.ne.s32.totalorder %s28, %s29
      %p40 = scmp.eq.s32.totalorder %s20, 0
      %p41 = por %p39, %p40
      %p42 = scmp.ne.s32.totalorder %s28, %s29
      %p43 = scmp.eq.s32.totalorder %s21, 2
      %p44 = por %p42, %p43
      %p46 = scmp.ne.s32.totalorder %s29, %s45
      %p47 = scmp.eq.s32.totalorder %s21, 0
      %p48 = por %p46, %p47
      %s50 = sadd.s32 %s49, 1
      %p53 = scmp.eq.s32.totalorder %s15, 2
      %p54 = scmp.ne.s32.totalorder %s49, %s51
      %p55 = scmp.eq.s32.totalorder %s15, 0
      %p56 = por %p54, %p55
      %p57 = scmp.ne.s32.totalorder %s49, %s51
      %p58 = scmp.eq.s32.totalorder %s20, 2
      %p59 = por %p57, %p58
      %p60 = scmp.ne.s32.totalorder %s51, %s52
      %p61 = scmp.eq.s32.totalorder %s20, 0
      %p62 = por %p60, %p61
      %p63 = scmp.ne.s32.totalorder %s51, %s52
      %p64 = scmp.eq.s32.totalorder %s21, 2
      %p65 = por %p63, %p64
      %p67 = scmp.ne.s32.totalorder %s52, %s66
      %p68 = scmp.eq.s32.totalorder %s21, 0
      %p69 = por %p67, %p68
      %s70 = ssub.s32 %s15, %s22
      %p71 = scmp.eq.s32.totalorder %s70, 0
      %s73 = sadd.s32 %s72, 1
      %s74 = scalar_select %p71, %s72, %s73
      %p77 = pneg %p71
      %p78 = scmp.eq.s32.totalorder %s15, 2
      %p79 = por %p77, %p78
      %p80 = scmp.ne.s32.totalorder %s72, %s75
      %p81 = scmp.eq.s32.totalorder %s15, 0
      %p82 = por %p80, %p81
      %p83 = scmp.ne.s32.totalorder %s72, %s75
      %p84 = scmp.eq.s32.totalorder %s20, 2
      %p85 = por %p83, %p84
      %p86 = scmp.ne.s32.totalorder %s75, %s76
      %p87 = scmp.eq.s32.totalorder %s20, 0
      %p88 = por %p86, %p87
      %p89 = scmp.ne.s32.totalorder %s75, %s76
      %p90 = scmp.eq.s32.totalorder %s21, 2
      %p91 = por %p89, %p90
      %p93 = scmp.ne.s32.totalorder %s76, %s92
      %p94 = scmp.eq.s32.totalorder %s21, 0
      %p95 = por %p93, %p94
      %p96 = scmp.le.s32.totalorder 1, %s15
      %p97 = scmp.lt.s32.totalorder %s15, 4
      %p98 = pnand %p96, %p97
      %p99 = pneg %p98
      // Predicated region
      $region9: #{tpu_custom_call.1} parent=5 // pred_check
        _
      $region10: #{tpu_custom_call.1} parent=5 // pred_check_branch
        %101 = sbr.rel (%p98) target = $region12
      $region11: #{tpu_custom_call.1} parent=5 // pred_region
        %s102 = ssub.s32 %s15, 1
        // Predicated region
        $region13: #{tpu_custom_call.1} parent=11 // pred_check
          %p103 = pneg %p62
        $region14: #{tpu_custom_call.1} parent=11 // pred_check_branch
          %105 = sbr.rel (%p103) target = $region16
        $region15: #{tpu_custom_call.1} parent=11 // pred_region
          %107 = vsyncadd [#allocation6], 0
          %s109 = sshll.u32 %s1, 4
          %s110 = int_to_ptr.hbm [resolvable:$true] %s109
          %s111 = sshll.u32 [#allocation5], 4
          %s112 = int_to_ptr.vmem [resolvable:$true] %s111
          %114 = dma.hbm_to_vmem [thread:$0]  %s110, 128, %s112, [#allocation6]
        $region16: #{tpu_custom_call.1} parent=11 // pred_fallthru
          _
      $region12: #{tpu_custom_call.1} parent=5 // pred_fallthru
        _
      %p115 = scmp.lt.s32.totalorder %s15, 3
      // Predicated region
      $region17: #{tpu_custom_call.1} parent=5 // pred_check
        %p116 = pneg %p115
      $region18: #{tpu_custom_call.1} parent=5 // pred_check_branch
        %118 = sbr.rel (%p116) target = $region20
      $region19: #{tpu_custom_call.1} parent=5 // pred_region
        // Predicated region
        $region21: #{tpu_custom_call.1} parent=19 // pred_check
          %p119 = pneg %p35
        $region22: #{tpu_custom_call.1} parent=19 // pred_check_branch
          %121 = sbr.rel (%p119) target = $region24
        $region23: #{tpu_custom_call.1} parent=19 // pred_region
          %s122 = sand.u32 %s25, 1
          %s123 = scalar_lea.sflag [#allocation3], %s122
          %s124 = sand.u32 %s25, 1
          %s125 = smul.addr %s124, 16
          %s126 = scalar_lea.vmem [#allocation2], %s125
          %s127 = smul.u32 4, %s15
          %129 = vsyncadd %s123, 0
          %s130 = smul.addr %s127, 4
          %s131 = scalar_lea.hbm %s0, %s130
          %s133 = sshll.u32 %s131, 4
          %s134 = int_to_ptr.hbm [resolvable:$true] %s133
          %s135 = sshll.u32 %s126, 4
          %s136 = int_to_ptr.vmem [resolvable:$true] %s135
          %138 = dma.hbm_to_vmem [thread:$0]  %s134, 256, %s136, %s123
        $region24: #{tpu_custom_call.1} parent=19 // pred_fallthru
          _
      $region20: #{tpu_custom_call.1} parent=5 // pred_fallthru
        _
      %p139 = scmp.le.s32.totalorder 1, %s15
      %p140 = scmp.lt.s32.totalorder %s15, 4
      %p141 = pnand %p139, %p140
      %p142 = pneg %p141
      // Predicated region
      $region25: #{tpu_custom_call.1} parent=5 // pred_check
        _
      $region26: #{tpu_custom_call.1} parent=5 // pred_check_branch
        %144 = sbr.rel (%p141) target = $region28
      $region27: #{tpu_custom_call.1} parent=5 // pred_region
        %s145 = ssub.s32 %s15, 1
        %s146 = sand.u32 %s28, 1
        %s147 = scalar_lea.sflag [#allocation3], %s146
        %s148 = sand.u32 %s28, 1
        %s149 = smul.addr %s148, 16
        %s150 = scalar_lea.vmem [#allocation2], %s149
        // Predicated region
        $region29: #{tpu_custom_call.1} parent=27 // pred_check
          %p151 = pneg %p41
        $region30: #{tpu_custom_call.1} parent=27 // pred_check_branch
          %153 = sbr.rel (%p151) target = $region32
        $region31: #{tpu_custom_call.1} parent=27 // pred_region
          %155 = dma.done %s147, 256
        $region32: #{tpu_custom_call.1} parent=27 // pred_fallthru
          _
        // Predicated region
        $region33: #{tpu_custom_call.1} parent=27 // pred_check
          %p156 = pneg %p62
        $region34: #{tpu_custom_call.1} parent=27 // pred_check_branch
          %158 = sbr.rel (%p156) target = $region36
        $region35: #{tpu_custom_call.1} parent=27 // pred_region
          %160 = dma.done [#allocation6], 128
        $region36: #{tpu_custom_call.1} parent=27 // pred_fallthru
          _
        %s161 = sand.u32 %s28, 1
        %s162 = scalar_lea.sflag [#allocation3], %s161
        %s163 = sand.u32 %s28, 1
        %s164 = smul.addr %s163, 16
        %s165 = scalar_lea.vmem [#allocation2], %s164
        %p166 = pneg %p41
        %p167 = pneg %p38
        %p168 = pneg %p62
        %p169 = pneg %p59
        %p170 = pneg %p88
        %p171 = pneg %p85
        %s172 = sand.u32 %s75, 1
        %s173 = scalar_lea.sflag [#allocation4], %s172
        %s174 = sand.u32 %s75, 1
        %s175 = smul.addr %s174, 4
        %s176 = scalar_lea.vmem [#allocation7], %s175
        %s177 = smul.u32 4, %s20
        %s178 = smul.u32 4, %s20
        %v179 = vld [vmem:[%s150] sm:$0xff]
        %v180 = vld [vmem:[%s150 + $0x8] sm:$0xff]
        %v181 = vld [vmem:[#allocation5] sm:$0xff]
        %183 = vset.pattern.permute.xlu0 4
        %184 = vperm.xlu0 %183, %v181
        %v185 = vpop.permute.xlu0 %184
        %189 = vst [vmem:[#allocation1] ss:$2 sm:$0xff] %v179
        %s190 = scalar_lea.vmem [#allocation1], 16
        %191 = vst [vmem:[%s190] ss:$2 sm:$0xff] %v180
        %v192 = vld.sshfl [vmem:[#allocation1] sm:$0xff pattern:$0x75316420]
        %v193 = vld.sshfl [vmem:[#allocation1 + $0x8] sm:$0xff pattern:$0x75316420]
        %v194 = vld.sshfl [vmem:[#allocation1 + $0x10] sm:$0xff pattern:$0x75316420]
        %v195 = vld.sshfl [vmem:[#allocation1 + $0x18] sm:$0xff pattern:$0x75316420]
        %vm196 = vcmask 31744
        %v197 = vsel %vm196, %v181, 0
        %vm199 = vcmask 1043456
        %v200 = vsel %vm199, %v192, 0
        %v202 = vsel %vm199, %v193, 0
        %v204 = vsel %vm199, %v194, 0
        %v206 = vsel %vm199, %v195, 0
        %208 = vmatpush.msra.mxu0 0.0
        %209 = vmatpush.msra.mxu0 0.0
        %210 = vmatpush.msra.mxu0 0.0
        %211 = vmatpush.msra.mxu0 0.0
        %212 = vmatpush.msra.mxu0 0.0
        %213 = vmatpush.msra.mxu0 0.0
        %214 = vmatpush.msra.mxu0 0.0
        %215 = vmatpush.msra.mxu0 0.0
        %216 = vmatpush.msra.mxu0 0.0
        %217 = vmatpush.msra.mxu0 0.0
        %218 = vmatpush.msra.mxu0 0.0
        %219 = vmatpush.msra.mxu0 0.0
        %220 = vmatpush.msra.mxu0 0.0
        %221 = vmatpush.msra.mxu0 0.0
        %222 = vmatpush.msra.mxu0 0.0
        %223 = vmatpush.msra.mxu0 %v200
        %224 = vmatmul.f32.gmra.mxu0 %v197
        %v225 = vpop.f32.mrf.mxu0
        %v226 = vadd.f32 %v185, %v225
        %227 = vdwg.mxu0
        %228 = vmatpush.msra.mxu0 0.0
        %229 = vmatpush.msra.mxu0 0.0
        %230 = vmatpush.msra.mxu0 0.0
        %231 = vmatpush.msra.mxu0 0.0
        %232 = vmatpush.msra.mxu0 0.0
        %233 = vmatpush.msra.mxu0 0.0
        %234 = vmatpush.msra.mxu0 0.0
        %235 = vmatpush.msra.mxu0 0.0
        %236 = vmatpush.msra.mxu0 0.0
        %237 = vmatpush.msra.mxu0 0.0
        %238 = vmatpush.msra.mxu0 0.0
        %239 = vmatpush.msra.mxu0 0.0
        %240 = vmatpush.msra.mxu0 0.0
        %241 = vmatpush.msra.mxu0 0.0
        %242 = vmatpush.msra.mxu0 0.0
        %243 = vmatpush.msra.mxu0 %v202
        %244 = vmatmul.f32.gmra.mxu0 %v197
        %v245 = vpop.f32.mrf.mxu0
        %v246 = vadd.f32 %v185, %v245
        %247 = vdwg.mxu0
        %248 = vmatpush.msra.mxu0 0.0
        %249 = vmatpush.msra.mxu0 0.0
        %250 = vmatpush.msra.mxu0 0.0
        %251 = vmatpush.msra.mxu0 0.0
        %252 = vmatpush.msra.mxu0 0.0
        %253 = vmatpush.msra.mxu0 0.0
        %254 = vmatpush.msra.mxu0 0.0
        %255 = vmatpush.msra.mxu0 0.0
        %256 = vmatpush.msra.mxu0 0.0
        %257 = vmatpush.msra.mxu0 0.0
        %258 = vmatpush.msra.mxu0 0.0
        %259 = vmatpush.msra.mxu0 0.0
        %260 = vmatpush.msra.mxu0 0.0
        %261 = vmatpush.msra.mxu0 0.0
        %262 = vmatpush.msra.mxu0 0.0
        %263 = vmatpush.msra.mxu0 %v204
        %264 = vmatmul.f32.gmra.mxu0 %v197
        %v265 = vpop.f32.mrf.mxu0
        %v266 = vadd.f32 %v185, %v265
        %267 = vdwg.mxu0
        %268 = vmatpush.msra.mxu0 0.0
        %269 = vmatpush.msra.mxu0 0.0
        %270 = vmatpush.msra.mxu0 0.0
        %271 = vmatpush.msra.mxu0 0.0
        %272 = vmatpush.msra.mxu0 0.0
        %273 = vmatpush.msra.mxu0 0.0
        %274 = vmatpush.msra.mxu0 0.0
        %275 = vmatpush.msra.mxu0 0.0
        %276 = vmatpush.msra.mxu0 0.0
        %277 = vmatpush.msra.mxu0 0.0
        %278 = vmatpush.msra.mxu0 0.0
        %279 = vmatpush.msra.mxu0 0.0
        %280 = vmatpush.msra.mxu0 0.0
        %281 = vmatpush.msra.mxu0 0.0
        %282 = vmatpush.msra.mxu0 0.0
        %283 = vmatpush.msra.mxu0 %v206
        %284 = vmatmul.f32.gmra.mxu0 %v197
        %v285 = vpop.f32.mrf.mxu0
        %v286 = vadd.f32 %v185, %v285
        %287 = vdwg.mxu0
        %v288 = vmax.f32 %v226, 0.0
        %v289 = vmax.f32 %v246, 0.0
        %v290 = vmax.f32 %v266, 0.0
        %v291 = vmax.f32 %v286, 0.0
        %292 = vset.pattern.permute.xlu0 13
        %293 = vperm.xlu0 %292, %v181
        %v294 = vpop.permute.xlu0 %293
        %296 = vrot.lane.b32.xlu0 %v181, 123
        %v297 = vpop.permute.xlu0 %296
        %vm298 = vcmask 64512
        %v299 = vsel %vm298, %v297, 0
        %301 = vmatpush.msra.mxu0 0.0
        %302 = vmatpush.msra.mxu0 0.0
        %303 = vmatpush.msra.mxu0 0.0
        %304 = vmatpush.msra.mxu0 0.0
        %305 = vmatpush.msra.mxu0 0.0
        %306 = vmatpush.msra.mxu0 0.0
        %307 = vmatpush.msra.mxu0 0.0
        %308 = vmatpush.msra.mxu0 0.0
        %309 = vmatpush.msra.mxu0 0.0
        %310 = vmatpush.msra.mxu0 0.0
        %311 = vmatpush.msra.mxu0 0.0
        %312 = vmatpush.msra.mxu0 0.0
        %313 = vmatpush.msra.mxu0 0.0
        %314 = vmatpush.msra.mxu0 0.0
        %315 = vmatpush.msra.mxu0 0.0
        %316 = vmatpush.msra.mxu0 %v288
        %317 = vmatmul.f32.gmra.mxu0 %v299
        %v318 = vpop.f32.mrf.mxu0
        %v319 = vadd.f32 %v294, %v318
        %320 = vdwg.mxu0
        %321 = vmatpush.msra.mxu0 0.0
        %322 = vmatpush.msra.mxu0 0.0
        %323 = vmatpush.msra.mxu0 0.0
        %324 = vmatpush.msra.mxu0 0.0
        %325 = vmatpush.msra.mxu0 0.0
        %326 = vmatpush.msra.mxu0 0.0
        %327 = vmatpush.msra.mxu0 0.0
        %328 = vmatpush.msra.mxu0 0.0
        %329 = vmatpush.msra.mxu0 0.0
        %330 = vmatpush.msra.mxu0 0.0
        %331 = vmatpush.msra.mxu0 0.0
        %332 = vmatpush.msra.mxu0 0.0
        %333 = vmatpush.msra.mxu0 0.0
        %334 = vmatpush.msra.mxu0 0.0
        %335 = vmatpush.msra.mxu0 0.0
        %336 = vmatpush.msra.mxu0 %v289
        %337 = vmatmul.f32.gmra.mxu0 %v299
        %v338 = vpop.f32.mrf.mxu0
        %v339 = vadd.f32 %v294, %v338
        %340 = vdwg.mxu0
        %341 = vmatpush.msra.mxu0 0.0
        %342 = vmatpush.msra.mxu0 0.0
        %343 = vmatpush.msra.mxu0 0.0
        %344 = vmatpush.msra.mxu0 0.0
        %345 = vmatpush.msra.mxu0 0.0
        %346 = vmatpush.msra.mxu0 0.0
        %347 = vmatpush.msra.mxu0 0.0
        %348 = vmatpush.msra.mxu0 0.0
        %349 = vmatpush.msra.mxu0 0.0
        %350 = vmatpush.msra.mxu0 0.0
        %351 = vmatpush.msra.mxu0 0.0
        %352 = vmatpush.msra.mxu0 0.0
        %353 = vmatpush.msra.mxu0 0.0
        %354 = vmatpush.msra.mxu0 0.0
        %355 = vmatpush.msra.mxu0 0.0
        %356 = vmatpush.msra.mxu0 %v290
        %357 = vmatmul.f32.gmra.mxu0 %v299
        %v358 = vpop.f32.mrf.mxu0
        %v359 = vadd.f32 %v294, %v358
        %360 = vdwg.mxu0
        %361 = vmatpush.msra.mxu0 0.0
        %362 = vmatpush.msra.mxu0 0.0
        %363 = vmatpush.msra.mxu0 0.0
        %364 = vmatpush.msra.mxu0 0.0
        %365 = vmatpush.msra.mxu0 0.0
        %366 = vmatpush.msra.mxu0 0.0
        %367 = vmatpush.msra.mxu0 0.0
        %368 = vmatpush.msra.mxu0 0.0
        %369 = vmatpush.msra.mxu0 0.0
        %370 = vmatpush.msra.mxu0 0.0
        %371 = vmatpush.msra.mxu0 0.0
        %372 = vmatpush.msra.mxu0 0.0
        %373 = vmatpush.msra.mxu0 0.0
        %374 = vmatpush.msra.mxu0 0.0
        %375 = vmatpush.msra.mxu0 0.0
        %376 = vmatpush.msra.mxu0 %v291
        %377 = vmatmul.f32.gmra.mxu0 %v299
        %v378 = vpop.f32.mrf.mxu0
        %v379 = vadd.f32 %v294, %v378
        %380 = vdwg.mxu0
        %v381 = vmax.f32 %v319, 0.0
        %v382 = vmax.f32 %v339, 0.0
        %v383 = vmax.f32 %v359, 0.0
        %v384 = vmax.f32 %v379, 0.0
        %385 = vset.pattern.permute.xlu0 14
        %386 = vperm.xlu0 %385, %v181
        %v387 = vpop.permute.xlu0 %386
        %v389 = vmul.f32 %v387, %v381
        %v390 = vmul.f32 %v387, %v382
        %v391 = vmul.f32 %v387, %v383
        %v392 = vmul.f32 %v387, %v384
        %v393 = vrot.slane %v389, 4
        %v394 = vadd.f32 %v389, %v393
        %v395 = vrot.slane %v394, 2
        %v396 = vadd.f32 %v394, %v395
        %v397 = vrot.slane %v396, 1
        %v398 = vadd.f32 %v396, %v397
        %v399 = vrot.slane %v390, 4
        %v400 = vadd.f32 %v390, %v399
        %v401 = vrot.slane %v400, 2
        %v402 = vadd.f32 %v400, %v401
        %v403 = vrot.slane %v402, 1
        %v404 = vadd.f32 %v402, %v403
        %v405 = vrot.slane %v391, 4
        %v406 = vadd.f32 %v391, %v405
        %v407 = vrot.slane %v406, 2
        %v408 = vadd.f32 %v406, %v407
        %v409 = vrot.slane %v408, 1
        %v410 = vadd.f32 %v408, %v409
        %v411 = vrot.slane %v392, 4
        %v412 = vadd.f32 %v392, %v411
        %v413 = vrot.slane %v412, 2
        %v414 = vadd.f32 %v412, %v413
        %v415 = vrot.slane %v414, 1
        %v416 = vadd.f32 %v414, %v415
        %417 = vset.pattern.permute.xlu0 15
        %418 = vperm.xlu0 %417, %v181
        %v419 = vpop.permute.xlu0 %418
        %v421 = vadd.f32 %v398, %v419
        %v422 = vadd.f32 %v404, %v419
        %v423 = vadd.f32 %v410, %v419
        %v424 = vadd.f32 %v416, %v419
        %v425 = vxor.u32 %v421, 2147483648
        %v426 = vxor.u32 %v422, 2147483648
        %v427 = vxor.u32 %v423, 2147483648
        %v428 = vxor.u32 %v424, 2147483648
        %v429 = vmul.f32 %v425, 1.442695
        %v430 = vpow.pop %v429
        %v431 = vmul.f32 %v426, 1.442695
        %v432 = vpow.pop %v431
        %v433 = vmul.f32 %v427, 1.442695
        %v434 = vpow.pop %v433
        %v435 = vmul.f32 %v428, 1.442695
        %v436 = vpow.pop %v435
        %v437 = vadd.f32 %v430, 1.0
        %v438 = vadd.f32 %v432, 1.0
        %v439 = vadd.f32 %v434, 1.0
        %v440 = vadd.f32 %v436, 1.0
        %v441 = vrcp.pop %v437
        %v442 = vmul.f32 %v437, %v441
        %v443 = vsub.f32 1.0, %v442
        %v444 = vmul.f32 %v441, %v443
        %v445 = vadd.f32 %v441, %v444
        %vm446 = vweird.f32 %v437
        %vm447 = vweird.f32 %v441
        %vm448 = vmor %vm446, %vm447
        %v449 = vsel %vm448, %v441, %v445
        %v450 = vand.u32 2147483647, %v437
        %vm451 = vcmp.eq.f32.partialorder %v450, 8.507059e+37
        %v452 = vand.u32 %v437, 2147483648
        %v453 = vor.u32 1.1754944e-38, %v452
        %v454 = vsel %vm451, %v453, %v449
        %v455 = vmul.f32 1.0, %v454
        %v456 = vrcp.pop %v438
        %v457 = vmul.f32 %v438, %v456
        %v458 = vsub.f32 1.0, %v457
        %v459 = vmul.f32 %v456, %v458
        %v460 = vadd.f32 %v456, %v459
        %vm461 = vweird.f32 %v438
        %vm462 = vweird.f32 %v456
        %vm463 = vmor %vm461, %vm462
        %v464 = vsel %vm463, %v456, %v460
        %v465 = vand.u32 2147483647, %v438
        %vm466 = vcmp.eq.f32.partialorder %v465, 8.507059e+37
        %v467 = vand.u32 %v438, 2147483648
        %v468 = vor.u32 1.1754944e-38, %v467
        %v469 = vsel %vm466, %v468, %v464
        %v470 = vmul.f32 1.0, %v469
        %v471 = vrcp.pop %v439
        %v472 = vmul.f32 %v439, %v471
        %v473 = vsub.f32 1.0, %v472
        %v474 = vmul.f32 %v471, %v473
        %v475 = vadd.f32 %v471, %v474
        %vm476 = vweird.f32 %v439
        %vm477 = vweird.f32 %v471
        %vm478 = vmor %vm476, %vm477
        %v479 = vsel %vm478, %v471, %v475
        %v480 = vand.u32 2147483647, %v439
        %vm481 = vcmp.eq.f32.partialorder %v480, 8.507059e+37
        %v482 = vand.u32 %v439, 2147483648
        %v483 = vor.u32 1.1754944e-38, %v482
        %v484 = vsel %vm481, %v483, %v479
        %v485 = vmul.f32 1.0, %v484
        %v486 = vrcp.pop %v440
        %v487 = vmul.f32 %v440, %v486
        %v488 = vsub.f32 1.0, %v487
        %v489 = vmul.f32 %v486, %v488
        %v490 = vadd.f32 %v486, %v489
        %vm491 = vweird.f32 %v440
        %vm492 = vweird.f32 %v486
        %vm493 = vmor %vm491, %vm492
        %v494 = vsel %vm493, %v486, %v490
        %v495 = vand.u32 2147483647, %v440
        %vm496 = vcmp.eq.f32.partialorder %v495, 8.507059e+37
        %v497 = vand.u32 %v440, 2147483648
        %v498 = vor.u32 1.1754944e-38, %v497
        %v499 = vsel %vm496, %v498, %v494
        %v500 = vmul.f32 1.0, %v499
        %v505 = vrot.slane %v470, 7
        %v506 = vrot.slane %v485, 6
        %v507 = vrot.slane %v500, 5
        %vm508 = vcmask 1040384
        %v509 = vsel %vm508, %v455, %v505
        %vm510 = vcmask 1042434
        %v511 = vsel %vm510, %v506, %v507
        %vm512 = vcmask 1041408
        %v513 = vsel %vm512, %v509, %v511
        %v515 = vlaneseq
        %vm516 = vcmp.ge.s32.totalorder %v515, 0
        %vm517 = vcmp.lt.s32.totalorder %v515, 512
        %vm518 = vmand %vm516, %vm517
        %519 = vst.msk [vmem:[%s176] sm:$0xf] %vm518, %v513
        %s520 = sand.u32 %s75, 1
        %s521 = scalar_lea.sflag [#allocation4], %s520
        %s522 = sand.u32 %s75, 1
        %s523 = smul.addr %s522, 4
        %s524 = scalar_lea.vmem [#allocation7], %s523
        // Predicated region
        $region37: #{tpu_custom_call.1} parent=27 // pred_check
          %p525 = pneg %p85
        $region38: #{tpu_custom_call.1} parent=27 // pred_check_branch
          %527 = sbr.rel (%p525) target = $region40
        $region39: #{tpu_custom_call.1} parent=27 // pred_region
          %s528 = smul.u32 4, %s20
          %530 = vsyncadd %s521, 0
          %s531 = scalar_lea.hbm %s2, %s528
          %s533 = sshll.u32 %s524, 4
          %s534 = int_to_ptr.vmem [resolvable:$true] %s533
          %s535 = sshll.u32 %s531, 4
          %s536 = int_to_ptr.hbm [resolvable:$true] %s535
          %538 = dma.vmem_to_hbm [thread:$0]  %s534, 64, %s536, %s521
        $region40: #{tpu_custom_call.1} parent=27 // pred_fallthru
          _
      $region28: #{tpu_custom_call.1} parent=5 // pred_fallthru
        _
      %p539 = scmp.le.s32.totalorder 2, %s15
      // Predicated region
      $region41: #{tpu_custom_call.1} parent=5 // pred_check
        %p540 = pneg %p539
      $region42: #{tpu_custom_call.1} parent=5 // pred_check_branch
        %542 = sbr.rel (%p540) target = $region44
      $region43: #{tpu_custom_call.1} parent=5 // pred_region
        %s543 = ssub.s32 %s15, 2
        // Predicated region
        $region45: #{tpu_custom_call.1} parent=43 // pred_check
          %p544 = pneg %p91
        $region46: #{tpu_custom_call.1} parent=43 // pred_check_branch
          %546 = sbr.rel (%p544) target = $region48
        $region47: #{tpu_custom_call.1} parent=43 // pred_region
          %s547 = sand.u32 %s76, 1
          %s548 = scalar_lea.sflag [#allocation4], %s547
          %s549 = sand.u32 %s76, 1
          %s550 = smul.addr %s549, 4
          %s551 = scalar_lea.vmem [#allocation7], %s550
          %553 = dma.done %s548, 64
        $region48: #{tpu_custom_call.1} parent=43 // pred_fallthru
          _
      $region44: #{tpu_custom_call.1} parent=5 // pred_fallthru
        _
    $region6: #{tpu_custom_call.1} parent=1 // loop_footer
      %s19 = sadd.s32 1, %s15
    $region7: #{tpu_custom_call.1} parent=1 // loop_footer_branch
      %14 = sbr.rel target = $region3
    $region8: #{tpu_custom_call.1} parent=1 // loop_exit
      _
    %554 = vsyncpa [#allocation3], 1
    %s555 = scalar_lea.sflag [#allocation3], 1
    %556 = vsyncpa %s555, 1
    %557 = vsyncpa [#allocation6], 1
    %558 = vsyncpa [#allocation4], 1
    %s559 = scalar_lea.sflag [#allocation4], 1
    %560 = vsyncpa %s559, 1

</llo_original>
